<compile_context>
chip_gen: v6e
topology: v6e:2x2x1
jax: 0.10.0
libtpu: 0.0.40
codegen_flags: <defaults>
</compile_context>

<pallas_src>
import functools
import math

import jax
import jax.numpy as jnp
from jax import lax
from jax.experimental import pallas as pl
from jax.experimental.pallas import tpu as pltpu


_NEG_BIG = -1.0e30   # finite "-inf": exp() underflows to exactly 0, never NaN


def _clip_loss_kernel(scale_ref, img_ref, txt_ref, col_ref, loss_ref,
                      m_row, s_row, acc, *, n, masked):
    i = pl.program_id(0)              # row-tile index ("parallel")
    j = pl.program_id(1)              # col-tile index (row-LSE reduction axis)
    nj = pl.num_programs(1)

    tm = img_ref.shape[0]
    tn = txt_ref.shape[1]
    row0 = i * tm
    col0 = j * tn
    scale = scale_ref[0]

    # ---- per-row-tile init of the online row stats / diag accumulator -------
    @pl.when(j == 0)
    def _():
        m_row[...] = jnp.full(m_row.shape, _NEG_BIG, dtype=jnp.float32)
        s_row[...] = jnp.zeros(s_row.shape, dtype=jnp.float32)
        acc[...] = jnp.zeros(acc.shape, dtype=jnp.float32)

    # ---- (tm, tn) logits tile: native-dtype (bf16) operands, f32 acc --------
    # logit_scale folded into the f32 tile once (no separate NxN scaling pass).
    logits = scale * jnp.dot(img_ref[...], txt_ref[...],
                             preferred_element_type=jnp.float32)

    if masked:
        r_ok = (row0 + lax.broadcasted_iota(jnp.int32, (tm, 1), 0)) < n
        c_ok = (col0 + lax.broadcasted_iota(jnp.int32, (1, tn), 1)) < n
        l_row = jnp.where(c_ok, logits, _NEG_BIG)    # mask padded text columns
        l_col = jnp.where(r_ok, logits, _NEG_BIG)    # mask padded image rows
    else:
        l_row = logits
        l_col = logits

    # ---- image->text CE: online logsumexp across the j (column) axis --------
    m_prev = m_row[...]
    m_new = jnp.maximum(m_prev, jnp.max(l_row, axis=1, keepdims=True))
    s_row[...] = (s_row[...] * jnp.exp(m_prev - m_new)
                  + jnp.sum(jnp.exp(l_row - m_new), axis=1, keepdims=True))
    m_row[...] = m_new

    # ---- text->image CE: this tile already holds all of row-tile i's rows
    #      for these columns, so emit the lane-dense per-row-tile LSE partial --
    m_c = jnp.max(l_col, axis=0, keepdims=True)                       # (1, tn)
    s_c = jnp.sum(jnp.exp(l_col - m_c), axis=0, keepdims=True)
    col_ref[...] = (m_c + jnp.log(s_c)).reshape(1, 1, tn)

    # ---- label diagonal: only tiles the diagonal actually crosses -----------
    @pl.when((row0 < col0 + tn) & (col0 < row0 + tm))
    def _():
        r = row0 + lax.broadcasted_iota(jnp.int32, (tm, 1), 0)
        c = col0 + lax.broadcasted_iota(jnp.int32, (1, tn), 1)
        dmask = r == c
        if masked:
            dmask = dmask & r_ok
        acc[...] = acc[...] - 2.0 * jnp.sum(jnp.where(dmask, logits, 0.0))

    # ---- finalize this row tile's partial loss -------------------------------
    @pl.when(j == nj - 1)
    def _():
        row_lse = m_row[...] + jnp.log(s_row[...])                    # (tm, 1)
        if masked:
            row_lse = jnp.where(r_ok, row_lse, 0.0)
        loss_ref[...] = (acc[...] + jnp.sum(row_lse)).reshape(1, 1, 1)


def _round_up(x, m):
    return -(-x // m) * m


def _default_block_rows():
    """Row-tile default: MXU-bound arithmetic intensity, VMEM-aware per chip."""
    try:
        kind = jax.devices()[0].device_kind.lower()
    except Exception:
        kind = ""
    if "v7" in kind:
        return 512            # 64 MiB VMEM (32 MiB default scoped): stay modest
    return 1024               # v5e / v6e: 128 MiB VMEM, push intensity higher


def clip_loss(image_features, text_features, logit_scale, *,
              block_rows=None, block_cols=None, compute_dtype=jnp.bfloat16):
    """ClipLoss forward (world_size=1). image/text_features: (N, D). f32 scalar."""
    n, d = image_features.shape
    assert text_features.shape == (n, d), (image_features.shape, text_features.shape)

    cd = jnp.dtype(compute_dtype) if compute_dtype is not None else image_features.dtype
    img = image_features.astype(cd)
    txt = text_features.astype(cd)

    lane = 128
    n128 = _round_up(n, lane)
    tn = block_cols if block_cols is not None else min(256, n128)
    tm = block_rows if block_rows is not None else min(_default_block_rows(), n128)
    assert tm % lane == 0 and tn % lane == 0, (tm, tn)

    n_pad = _round_up(n, math.lcm(tm, tn))
    if n_pad != n:
        img = jnp.pad(img, ((0, n_pad - n), (0, 0)))
        txt = jnp.pad(txt, ((0, n_pad - n), (0, 0)))
    txt_t = txt.T                              # (d, n_pad): one-time transpose
    ni = n_pad // tm
    nj = n_pad // tn
    masked = (n_pad != n)

    scale = jnp.asarray(logit_scale, dtype=jnp.float32).reshape((1,))
    kernel = functools.partial(_clip_loss_kernel, n=n, masked=masked)

    isz = cd.itemsize
    cost = pl.CostEstimate(
        flops=int(2 * n_pad * n_pad * d + 12 * n_pad * n_pad),
        transcendentals=int(2 * n_pad * n_pad),
        bytes_accessed=int((1 + ni) * n_pad * d * isz + ni * (n_pad + 1) * 4 + 4),
    )

    col_parts, loss_parts = pl.pallas_call(
        kernel,
        out_shape=(
            jax.ShapeDtypeStruct((ni, 1, n_pad), jnp.float32),  # per-row-tile col LSE
            jax.ShapeDtypeStruct((ni, 1, 1), jnp.float32),      # per-row-tile partial loss
        ),
        grid_spec=pltpu.PrefetchScalarGridSpec(
            num_scalar_prefetch=0,
            grid=(ni, nj),
            in_specs=[
                pl.BlockSpec(memory_space=pltpu.MemorySpace.SMEM),   # logit_scale
                pl.BlockSpec((tm, d), lambda i, j: (i, 0)),          # image rows
                pl.BlockSpec((d, tn), lambda i, j: (0, j)),          # text (pre-transposed)
            ],
            out_specs=[
                pl.BlockSpec((1, 1, tn), lambda i, j: (i, 0, j)),
                pl.BlockSpec((1, 1, 1), lambda i, j: (i, 0, 0)),
            ],
            scratch_shapes=[
                pltpu.VMEM((tm, 1), jnp.float32),    # running row max
                pltpu.VMEM((tm, 1), jnp.float32),    # running row sum(exp)
                pltpu.VMEM((1, 1), jnp.float32),     # per-row-tile loss accumulator
            ],
        ),
        compiler_params=pltpu.CompilerParams(
            dimension_semantics=("parallel", "arbitrary"),
            vmem_limit_bytes=32 * 1024 * 1024),
        cost_estimate=cost,
    )(scale, img, txt_t)

    # Tiny epilogue: merge per-row-tile column-LSE partials and row partials.
    col_lse = jax.scipy.special.logsumexp(col_parts[:, 0, :], axis=0)   # (n_pad,)
    if masked:
        col_lse = jnp.where(jnp.arange(n_pad) < n, col_lse, 0.0)
    return (jnp.sum(loss_parts) + jnp.sum(col_lse)) / (2.0 * n)


def clip_loss_ref(image_features, text_features, logit_scale):
    """Pure-JAX reference matching the PyTorch module (world_size=1)."""
    img = image_features.astype(jnp.float32)
    txt = text_features.astype(jnp.float32)
    logits_per_image = logit_scale * jnp.dot(img, txt.T,
                                             precision=lax.Precision.HIGHEST)
    logits_per_text = logits_per_image.T
    n = img.shape[0]
    idx = jnp.arange(n)

    def ce(logits):
        lse = jax.scipy.special.logsumexp(logits, axis=1)
        return jnp.mean(lse - logits[idx, idx])

    return (ce(logits_per_image) + ce(logits_per_text)) / 2.0


if __name__ == "__main__":
    key = jax.random.PRNGKey(0)
    logit_scale = jnp.float32(14.285714)   # ~ exp(log(1/0.07))

    def check(img, txt, **kw):
        loss = clip_loss(img, txt, logit_scale, **kw)
        jax.block_until_ready(loss)
        cd = kw.get("compute_dtype", jnp.bfloat16)
        ref = clip_loss_ref(img.astype(cd), txt.astype(cd), logit_scale)
        assert jnp.allclose(loss, ref, rtol=1e-2, atol=1e-2), (loss, ref, img.shape, kw)

    k1, k2, k3, k4, k5, k6 = jax.random.split(key, 6)

    # 1) tiny smoke test: defaults (auto tiles, N=8 padded to 128, grid (1, 1))
    check(jax.random.normal(k1, (8, 32), dtype=jnp.float32),
          jax.random.normal(k2, (8, 32), dtype=jnp.float32))

    # 2) multi-tile, decoupled tm != tn, no padding: grid (2, 4); exercises the
    #    online row LSE, the global-index diagonal crossing two col tiles per
    #    row tile, and the lane-dense column partials.
    check(jax.random.normal(k3, (512, 64), dtype=jnp.float32),
          jax.random.normal(k4, (512, 64), dtype=jnp.float32),
          block_rows=256, block_cols=128)

    # 3) ragged N (260 -> padded 512): grid (4, 2); includes a fully padded row
    #    tile and a partially padded column tile (masked-LSE / masked-diag path).
    check(jax.random.normal(k5, (260, 32), dtype=jnp.float32),
          jax.random.normal(k6, (260, 32), dtype=jnp.float32),
          block_rows=128, block_cols=256)

    print("KERNEL_OK")
</pallas_src>

<mosaic_0001>
module attributes {stable_mosaic.version = 11 : i64} {
  func.func @_clip_loss_kernel(%arg0: i32, %arg1: i32, %arg2: memref<1xf32, #tpu.memory_space<smem>>, %arg3: memref<128x32xbf16, #tpu.memory_space<vmem>>, %arg4: memref<32x128xbf16, #tpu.memory_space<vmem>>, %arg5: memref<1x1x128xf32, #tpu.memory_space<vmem>>, %arg6: memref<1x1x1xf32, #tpu.memory_space<vmem>>, %arg7: memref<128x1xf32, #tpu.memory_space<vmem>>, %arg8: memref<128x1xf32, #tpu.memory_space<vmem>>, %arg9: memref<1x1xf32, #tpu.memory_space<vmem>>) attributes {dimension_semantics = [#tpu.dimension_semantics<parallel>, #tpu.dimension_semantics<arbitrary>], iteration_bounds = array<i64: 1, 1>, scalar_prefetch = 0 : i64, scratch_operands = 3 : i64, tpu.core_type = #tpu.core_type<tc>, window_params = [{transform_indices = @transform_0, window_bounds = array<i64: 1>}, {transform_indices = @transform_1, window_bounds = array<i64: 128, 32>}, {transform_indices = @transform_2, window_bounds = array<i64: 32, 128>}, {transform_indices = @transform_3, window_bounds = array<i64: 1, 1, 128>}, {transform_indices = @transform_4, window_bounds = array<i64: 1, 1, 1>}]} {
    %c128_i32 = arith.constant 128 : i32
    %0 = arith.muli %arg0, %c128_i32 : i32
    %c128_i32_0 = arith.constant 128 : i32
    %1 = arith.muli %arg1, %c128_i32_0 : i32
    %c0 = arith.constant 0 : index
    %2 = memref.load %arg2[%c0] : memref<1xf32, #tpu.memory_space<smem>>
    %c0_i32 = arith.constant 0 : i32
    %3 = arith.cmpi eq, %arg1, %c0_i32 : i32
    %4 = arith.extui %3 : i1 to i32
    %c0_i32_1 = arith.constant 0 : i32
    %5 = arith.cmpi ne, %4, %c0_i32_1 : i32
    scf.if %5 {
      %cst_29 = arith.constant -1.000000e+30 : f32
      %66 = vector.broadcast %cst_29 : f32 to vector<128x1xf32>
      %c0_30 = arith.constant 0 : index
      %c0_31 = arith.constant 0 : index
      %67 = vector.load %arg7[%c0_30, %c0_31] : memref<128x1xf32, #tpu.memory_space<vmem>>, vector<128x1xf32>
      tpu.vector_store %arg7[%c0_30, %c0_31], %66 {strides = array<i32>} : memref<128x1xf32, #tpu.memory_space<vmem>>, vector<128x1xf32>,
      %cst_32 = arith.constant 0.000000e+00 : f32
      %68 = vector.broadcast %cst_32 : f32 to vector<128x1xf32>
      %c0_33 = arith.constant 0 : index
      %c0_34 = arith.constant 0 : index
      %69 = vector.load %arg8[%c0_33, %c0_34] : memref<128x1xf32, #tpu.memory_space<vmem>>, vector<128x1xf32>
      tpu.vector_store %arg8[%c0_33, %c0_34], %68 {strides = array<i32>} : memref<128x1xf32, #tpu.memory_space<vmem>>, vector<128x1xf32>,
      %cst_35 = arith.constant 0.000000e+00 : f32
      %70 = vector.broadcast %cst_35 : f32 to vector<1x1xf32>
      %c0_36 = arith.constant 0 : index
      %c0_37 = arith.constant 0 : index
      %71 = vector.load %arg9[%c0_36, %c0_37] : memref<1x1xf32, #tpu.memory_space<vmem>>, vector<1x1xf32>
      tpu.vector_store %arg9[%c0_36, %c0_37], %70 {strides = array<i32>} : memref<1x1xf32, #tpu.memory_space<vmem>>, vector<1x1xf32>,
    } else {
    }
    %c0_2 = arith.constant 0 : index
    %c0_3 = arith.constant 0 : index
    %6 = vector.load %arg3[%c0_2, %c0_3] : memref<128x32xbf16, #tpu.memory_space<vmem>>, vector<128x32xbf16>
    %c0_4 = arith.constant 0 : index
    %c0_5 = arith.constant 0 : index
    %7 = vector.load %arg4[%c0_4, %c0_5] : memref<32x128xbf16, #tpu.memory_space<vmem>>, vector<32x128xbf16>
    %cst = arith.constant dense<0.000000e+00> : vector<128x128xf32>
    %8 = tpu.matmul %6, %7, %cst {dimension_numbers = #tpu.dot_dimension_numbers<[1], [0], [0], [1], [0, 0, 1, 1], [], []>} : vector<128x32xbf16>, vector<32x128xbf16>, vector<128x128xf32> -> vector<128x128xf32>
    %9 = vector.broadcast %2 : f32 to vector<128x128xf32>
    %10 = arith.mulf %9, %8 : vector<128x128xf32>
    %11 = tpu.iota {dimensions = array<i32: 0>} : vector<128x1xi32>
    %12 = vector.broadcast %0 : i32 to vector<128x1xi32>
    %13 = arith.addi %12, %11 : vector<128x1xi32>
    %c8_i32 = arith.constant 8 : i32
    %14 = vector.broadcast %c8_i32 : i32 to vector<128x1xi32>
    %15 = arith.cmpi slt, %13, %14 : vector<128x1xi32>
    %16 = tpu.iota {dimensions = array<i32: 1>} : vector<1x128xi32>
    %17 = vector.broadcast %1 : i32 to vector<1x128xi32>
    %18 = arith.addi %17, %16 : vector<1x128xi32>
    %c8_i32_6 = arith.constant 8 : i32
    %19 = vector.broadcast %c8_i32_6 : i32 to vector<1x128xi32>
    %20 = arith.cmpi slt, %18, %19 : vector<1x128xi32>
    %cst_7 = arith.constant -1.000000e+30 : f32
    %21 = vector.shape_cast %20 : vector<1x128xi1> to vector<1x128xi1>
    %22 = vector.broadcast %21 : vector<1x128xi1> to vector<128x128xi1>
    %23 = vector.broadcast %cst_7 : f32 to vector<128x128xf32>
    %24 = arith.select %22, %10, %23 : vector<128x128xi1>, vector<128x128xf32>
    %cst_8 = arith.constant -1.000000e+30 : f32
    %25 = vector.shape_cast %15 : vector<128x1xi1> to vector<128x1xi1>
    %26 = vector.broadcast %25 : vector<128x1xi1> to vector<128x128xi1>
    %27 = vector.broadcast %cst_8 : f32 to vector<128x128xf32>
    %28 = arith.select %26, %10, %27 : vector<128x128xi1>, vector<128x128xf32>
    %c0_9 = arith.constant 0 : index
    %c0_10 = arith.constant 0 : index
    %29 = vector.load %arg7[%c0_9, %c0_10] : memref<128x1xf32, #tpu.memory_space<vmem>>, vector<128x1xf32>
    %cst_11 = arith.constant dense<0xFF800000> : vector<128xf32>
    %30 = vector.multi_reduction <maximumf>, %24, %cst_11 [1] : vector<128x128xf32> to vector<128xf32>
    %31 = vector.shape_cast %30 : vector<128xf32> to vector<128x1xf32>
    %32 = arith.maximumf %29, %31 : vector<128x1xf32>
    %c0_12 = arith.constant 0 : index
    %c0_13 = arith.constant 0 : index
    %33 = vector.load %arg8[%c0_12, %c0_13] : memref<128x1xf32, #tpu.memory_space<vmem>>, vector<128x1xf32>
    %34 = arith.subf %29, %32 : vector<128x1xf32>
    %35 = math.exp %34 : vector<128x1xf32>
    %36 = arith.mulf %33, %35 : vector<128x1xf32>
    %37 = vector.broadcast %32 : vector<128x1xf32> to vector<128x128xf32>
    %38 = arith.subf %24, %37 : vector<128x128xf32>
    %39 = math.exp %38 : vector<128x128xf32>
    %cst_14 = arith.constant dense<0.000000e+00> : vector<128xf32>
    %40 = vector.multi_reduction <add>, %39, %cst_14 [1] : vector<128x128xf32> to vector<128xf32>
    %41 = vector.shape_cast %40 : vector<128xf32> to vector<128x1xf32>
    %42 = arith.addf %36, %41 : vector<128x1xf32>
    %c0_15 = arith.constant 0 : index
    %c0_16 = arith.constant 0 : index
    %43 = vector.load %arg8[%c0_15, %c0_16] : memref<128x1xf32, #tpu.memory_space<vmem>>, vector<128x1xf32>
    tpu.vector_store %arg8[%c0_15, %c0_16], %42 {strides = array<i32>} : memref<128x1xf32, #tpu.memory_space<vmem>>, vector<128x1xf32>,
    %c0_17 = arith.constant 0 : index
    %c0_18 = arith.constant 0 : index
    %44 = vector.load %arg7[%c0_17, %c0_18] : memref<128x1xf32, #tpu.memory_space<vmem>>, vector<128x1xf32>
    tpu.vector_store %arg7[%c0_17, %c0_18], %32 {strides = array<i32>} : memref<128x1xf32, #tpu.memory_space<vmem>>, vector<128x1xf32>,
    %cst_19 = arith.constant dense<0xFF800000> : vector<128xf32>
    %45 = vector.multi_reduction <maximumf>, %28, %cst_19 [0] : vector<128x128xf32> to vector<128xf32>
    %46 = vector.shape_cast %45 : vector<128xf32> to vector<1x128xf32>
    %47 = vector.broadcast %46 : vector<1x128xf32> to vector<128x128xf32>
    %48 = arith.subf %28, %47 : vector<128x128xf32>
    %49 = math.exp %48 : vector<128x128xf32>
    %cst_20 = arith.constant dense<0.000000e+00> : vector<128xf32>
    %50 = vector.multi_reduction <add>, %49, %cst_20 [0] : vector<128x128xf32> to vector<128xf32>
    %51 = vector.shape_cast %50 : vector<128xf32> to vector<1x128xf32>
    %52 = math.log %51 : vector<1x128xf32>
    %53 = arith.addf %46, %52 : vector<1x128xf32>
    %54 = vector.shape_cast %53 : vector<1x128xf32> to vector<1x1x128xf32>
    %c0_21 = arith.constant 0 : index
    %c0_22 = arith.constant 0 : index
    %c0_23 = arith.constant 0 : index
    %55 = vector.load %arg5[%c0_21, %c0_22, %c0_23] : memref<1x1x128xf32, #tpu.memory_space<vmem>>, vector<1x1x128xf32>
    tpu.vector_store %arg5[%c0_21, %c0_22, %c0_23], %54 {strides = array<i32>} : memref<1x1x128xf32, #tpu.memory_space<vmem>>, vector<1x1x128xf32>,
    %c128_i32_24 = arith.constant 128 : i32
    %56 = arith.addi %1, %c128_i32_24 : i32
    %57 = arith.cmpi slt, %0, %56 : i32
    %c128_i32_25 = arith.constant 128 : i32
    %58 = arith.addi %0, %c128_i32_25 : i32
    %59 = arith.cmpi slt, %1, %58 : i32
    %60 = arith.andi %57, %59 : i1
    %61 = arith.extui %60 : i1 to i32
    %c0_i32_26 = arith.constant 0 : i32
    %62 = arith.cmpi ne, %61, %c0_i32_26 : i32
    scf.if %62 {
      %66 = tpu.iota {dimensions = array<i32: 0>} : vector<128x1xi32>
      %67 = vector.broadcast %0 : i32 to vector<128x1xi32>
      %68 = arith.addi %67, %66 : vector<128x1xi32>
      %69 = tpu.iota {dimensions = array<i32: 1>} : vector<1x128xi32>
      %70 = vector.broadcast %1 : i32 to vector<1x128xi32>
      %71 = arith.addi %70, %69 : vector<1x128xi32>
      %72 = vector.broadcast %68 : vector<128x1xi32> to vector<128x128xi32>
      %73 = vector.broadcast %71 : vector<1x128xi32> to vector<128x128xi32>
      %74 = arith.cmpi eq, %72, %73 : vector<128x128xi32>
      %75 = vector.broadcast %15 : vector<128x1xi1> to vector<128x128xi1>
      %76 = arith.andi %74, %75 : vector<128x128xi1>
      %c0_29 = arith.constant 0 : index
      %c0_30 = arith.constant 0 : index
      %77 = vector.load %arg9[%c0_29, %c0_30] : memref<1x1xf32, #tpu.memory_space<vmem>>, vector<1x1xf32>
      %cst_31 = arith.constant 0.000000e+00 : f32
      %78 = vector.broadcast %cst_31 : f32 to vector<128x128xf32>
      %79 = arith.select %76, %10, %78 : vector<128x128xi1>, vector<128x128xf32>
      %80 = vector.shape_cast %79 : vector<128x128xf32> to vector<1x128x128xf32>
      %cst_32 = arith.constant dense<0.000000e+00> : vector<1xf32>
      %81 = vector.multi_reduction <add>, %80, %cst_32 [1, 2] : vector<1x128x128xf32> to vector<1xf32>
      %82 = vector.shape_cast %81 : vector<1xf32> to vector<1x1x1xf32>
      %83 = vector.extract %82[0, 0, 0] : f32 from vector<1x1x1xf32>
      %cst_33 = arith.constant 2.000000e+00 : f32
      %84 = arith.mulf %cst_33, %83 : f32
      %85 = vector.broadcast %84 : f32 to vector<1x1xf32>
      %86 = arith.subf %77, %85 : vector<1x1xf32>
      %c0_34 = arith.constant 0 : index
      %c0_35 = arith.constant 0 : index
      %87 = vector.load %arg9[%c0_34, %c0_35] : memref<1x1xf32, #tpu.memory_space<vmem>>, vector<1x1xf32>
      tpu.vector_store %arg9[%c0_34, %c0_35], %86 {strides = array<i32>} : memref<1x1xf32, #tpu.memory_space<vmem>>, vector<1x1xf32>,
    } else {
    }
    %c0_i32_27 = arith.constant 0 : i32
    %63 = arith.cmpi eq, %arg1, %c0_i32_27 : i32
    %64 = arith.extui %63 : i1 to i32
    %c0_i32_28 = arith.constant 0 : i32
    %65 = arith.cmpi ne, %64, %c0_i32_28 : i32
    scf.if %65 {
      %c0_29 = arith.constant 0 : index
      %c0_30 = arith.constant 0 : index
      %66 = vector.load %arg7[%c0_29, %c0_30] : memref<128x1xf32, #tpu.memory_space<vmem>>, vector<128x1xf32>
      %c0_31 = arith.constant 0 : index
      %c0_32 = arith.constant 0 : index
      %67 = vector.load %arg8[%c0_31, %c0_32] : memref<128x1xf32, #tpu.memory_space<vmem>>, vector<128x1xf32>
      %68 = math.log %67 : vector<128x1xf32>
      %69 = arith.addf %66, %68 : vector<128x1xf32>
      %cst_33 = arith.constant 0.000000e+00 : f32
      %70 = vector.broadcast %cst_33 : f32 to vector<128x1xf32>
      %71 = arith.select %15, %69, %70 : vector<128x1xi1>, vector<128x1xf32>
      %c0_34 = arith.constant 0 : index
      %c0_35 = arith.constant 0 : index
      %72 = vector.load %arg9[%c0_34, %c0_35] : memref<1x1xf32, #tpu.memory_space<vmem>>, vector<1x1xf32>
      %73 = vector.shape_cast %71 : vector<128x1xf32> to vector<1x128x1xf32>
      %cst_36 = arith.constant dense<0.000000e+00> : vector<1xf32>
      %74 = vector.multi_reduction <add>, %73, %cst_36 [1, 2] : vector<1x128x1xf32> to vector<1xf32>
      %75 = vector.shape_cast %74 : vector<1xf32> to vector<1x1x1xf32>
      %76 = vector.extract %75[0, 0, 0] : f32 from vector<1x1x1xf32>
      %77 = vector.broadcast %76 : f32 to vector<1x1xf32>
      %78 = arith.addf %72, %77 : vector<1x1xf32>
      %79 = vector.shape_cast %78 : vector<1x1xf32> to vector<1x1x1xf32>
      %c0_37 = arith.constant 0 : index
      %c0_38 = arith.constant 0 : index
      %c0_39 = arith.constant 0 : index
      %80 = vector.load %arg6[%c0_37, %c0_38, %c0_39] : memref<1x1x1xf32, #tpu.memory_space<vmem>>, vector<1x1x1xf32>
      tpu.vector_store %arg6[%c0_37, %c0_38, %c0_39], %79 {strides = array<i32>} : memref<1x1x1xf32, #tpu.memory_space<vmem>>, vector<1x1x1xf32>,
    } else {
    }
    return
  }
  func.func @transform_0(%arg0: i32, %arg1: i32) -> i32 {
    %c0_i32 = arith.constant 0 : i32
    %c0_i32_0 = arith.constant 0 : i32
    return %c0_i32 : i32
  }
  func.func @transform_1(%arg0: i32, %arg1: i32) -> (i32, i32) {
    %c0_i32 = arith.constant 0 : i32
    %c0_i32_0 = arith.constant 0 : i32
    return %arg0, %c0_i32 : i32, i32
  }
  func.func @transform_2(%arg0: i32, %arg1: i32) -> (i32, i32) {
    %c0_i32 = arith.constant 0 : i32
    %c0_i32_0 = arith.constant 0 : i32
    return %c0_i32, %arg1 : i32, i32
  }
  func.func @transform_3(%arg0: i32, %arg1: i32) -> (i32, i32, i32) {
    %c0_i32 = arith.constant 0 : i32
    %c0_i32_0 = arith.constant 0 : i32
    return %arg0, %c0_i32, %arg1 : i32, i32, i32
  }
  func.func @transform_4(%arg0: i32, %arg1: i32) -> (i32, i32, i32) {
    %c0_i32 = arith.constant 0 : i32
    %c0_i32_0 = arith.constant 0 : i32
    %c0_i32_1 = arith.constant 0 : i32
    return %arg0, %c0_i32, %c0_i32_0 : i32, i32, i32
  }
}

</mosaic_0001>

<llo_original>
// kernel: tpu_custom_call.1
$region0: #{tpu_custom_call.1}
  #allocation0 [shape = 'u32[]', space=smem, size = 0x4, offset = 0x4, fixed_abs, tag = 'smem constant byte address 0x4 - core index']
  #allocation1 [shape = 'u32[144,128]{1,0:T(1,128)}', space=vmem, size = 0x12000, scoped, tag = 'internal scratch']
  #allocation2 [shape = 'f32[128,1]{1,0:T(8,128)}', space=vmem, size = 0x10000, scoped, tag = 'scratch operand']
  #allocation3 [shape = 'f32[128,1]{1,0:T(8,128)}', space=vmem, size = 0x10000, scoped, tag = 'scratch operand']
  #allocation4 [shape = 'f32[1,1]{1,0:T(1,128)}', space=vmem, size = 0x200, scoped, tag = 'scratch operand']
  #allocation5 [shape = 'f32[1]{0:T(128)S(6)}', space=smem, size = 0x200, scoped, tag = 'scoped memory for tpu_custom_call.1']
  %s0 = inlined_call_operand.<no memory space> [shape: f32[1], index: 0, kind: input, shape index: {}]
  %s1 = inlined_call_operand.vmem [shape: bf16[128,32], index: 1, kind: input, shape index: {}]
  %s2 = inlined_call_operand.vmem [shape: bf16[32,128], index: 2, kind: input, shape index: {}]
  %s3 = inlined_call_operand.hbm [shape: f32[1,1,128], index: 3, kind: output, shape index: {0}]
  %s4 = inlined_call_operand.hbm [shape: f32[1,1,1], index: 4, kind: output, shape index: {1}]
  %5 = xla_tuple %s3, %s4
  %s6 = sld [smem:[#allocation0]]
  $region42: #{tpu_custom_call.1} parent=0
    _
  %s8 = ssub.s32 1, %s6
  %s9 = scalar_select 0, %s8, %s6
  %10 = sst [smem:[#allocation5]] %s0
  $region1: #{tpu_custom_call.1} parent=0
    #allocation6 [shape = 'u8[512]{0}', space=vmem, size = 0x400, scoped, tag = 'output window, operand 0, single buffered']
    #allocation7 [shape = 's32[1]{0}', space=sflag, size = 0x4, scoped, tag = 'scoped memory for tpu_custom_call.1']
    #allocation8 [shape = 'u8[512]{0}', space=vmem, size = 0x400, scoped, tag = 'output window, operand 1, single buffered']
    #allocation9 [shape = 's32[1]{0}', space=sflag, size = 0x4, scoped, tag = 'scoped memory for tpu_custom_call.1']
    %11 = vsyncpa [#allocation7], 0
    %12 = vsyncpa [#allocation9], 0
    // Predicated region
    $region2: #{tpu_custom_call.1} parent=1 // pred_check
      _
    $region3: #{tpu_custom_call.1} parent=1 // pred_check_branch
      %14 = sbr.rel (0) target = $region5
    $region4: #{tpu_custom_call.1} parent=1 // pred_region
      _
    $region5: #{tpu_custom_call.1} parent=1 // pred_fallthru
      _
    // Predicated region
    $region6: #{tpu_custom_call.1} parent=1 // pred_check
      _
    $region7: #{tpu_custom_call.1} parent=1 // pred_check_branch
      %16 = sbr.rel (0) target = $region9
    $region8: #{tpu_custom_call.1} parent=1 // pred_region
      _
    $region9: #{tpu_custom_call.1} parent=1 // pred_fallthru
      _
    // Predicated region
    $region10: #{tpu_custom_call.1} parent=1 // pred_check
      _
    $region11: #{tpu_custom_call.1} parent=1 // pred_check_branch
      %18 = sbr.rel (0) target = $region13
    $region12: #{tpu_custom_call.1} parent=1 // pred_region
      _
    $region13: #{tpu_custom_call.1} parent=1 // pred_fallthru
      _
    %s20 = smul.u32 0, 128
    %s21 = smul.u32 0, 128
    %s22 = sld [smem:[#allocation5]]
    %p23 = scmp.eq.s32.totalorder 0, 0
    // Predicated region
    $region14: #{tpu_custom_call.1} parent=1 // pred_check
      %p24 = pneg %p23
    $region15: #{tpu_custom_call.1} parent=1 // pred_check_branch
      %26 = sbr.rel (%p24) target = $region17
    $region16: #{tpu_custom_call.1} parent=1 // pred_region
      %vm27 = vcmask 7168
      %28 = vst.msk [vmem:[#allocation2] sm:$0xff] %vm27, -1e+30
      %29 = vst.msk [vmem:[#allocation2 + $0x8] sm:$0xff] %vm27, -1e+30
      %30 = vst.msk [vmem:[#allocation2 + $0x10] sm:$0xff] %vm27, -1e+30
      %31 = vst.msk [vmem:[#allocation2 + $0x18] sm:$0xff] %vm27, -1e+30
      %32 = vst.msk [vmem:[#allocation2 + $0x20] sm:$0xff] %vm27, -1e+30
      %33 = vst.msk [vmem:[#allocation2 + $0x28] sm:$0xff] %vm27, -1e+30
      %34 = vst.msk [vmem:[#allocation2 + $0x30] sm:$0xff] %vm27, -1e+30
      %35 = vst.msk [vmem:[#allocation2 + $0x38] sm:$0xff] %vm27, -1e+30
      %36 = vst.msk [vmem:[#allocation2 + $0x40] sm:$0xff] %vm27, -1e+30
      %37 = vst.msk [vmem:[#allocation2 + $0x48] sm:$0xff] %vm27, -1e+30
      %38 = vst.msk [vmem:[#allocation2 + $0x50] sm:$0xff] %vm27, -1e+30
      %39 = vst.msk [vmem:[#allocation2 + $0x58] sm:$0xff] %vm27, -1e+30
      %40 = vst.msk [vmem:[#allocation2 + $0x60] sm:$0xff] %vm27, -1e+30
      %41 = vst.msk [vmem:[#allocation2 + $0x68] sm:$0xff] %vm27, -1e+30
      %42 = vst.msk [vmem:[#allocation2 + $0x70] sm:$0xff] %vm27, -1e+30
      %43 = vst.msk [vmem:[#allocation2 + $0x78] sm:$0xff] %vm27, -1e+30
      %44 = vst.msk [vmem:[#allocation3] sm:$0xff] %vm27, 0.0
      %45 = vst.msk [vmem:[#allocation3 + $0x8] sm:$0xff] %vm27, 0.0
      %46 = vst.msk [vmem:[#allocation3 + $0x10] sm:$0xff] %vm27, 0.0
      %47 = vst.msk [vmem:[#allocation3 + $0x18] sm:$0xff] %vm27, 0.0
      %48 = vst.msk [vmem:[#allocation3 + $0x20] sm:$0xff] %vm27, 0.0
      %49 = vst.msk [vmem:[#allocation3 + $0x28] sm:$0xff] %vm27, 0.0
      %50 = vst.msk [vmem:[#allocation3 + $0x30] sm:$0xff] %vm27, 0.0
      %51 = vst.msk [vmem:[#allocation3 + $0x38] sm:$0xff] %vm27, 0.0
      %52 = vst.msk [vmem:[#allocation3 + $0x40] sm:$0xff] %vm27, 0.0
      %53 = vst.msk [vmem:[#allocation3 + $0x48] sm:$0xff] %vm27, 0.0
      %54 = vst.msk [vmem:[#allocation3 + $0x50] sm:$0xff] %vm27, 0.0
      %55 = vst.msk [vmem:[#allocation3 + $0x58] sm:$0xff] %vm27, 0.0
      %56 = vst.msk [vmem:[#allocation3 + $0x60] sm:$0xff] %vm27, 0.0
      %57 = vst.msk [vmem:[#allocation3 + $0x68] sm:$0xff] %vm27, 0.0
      %58 = vst.msk [vmem:[#allocation3 + $0x70] sm:$0xff] %vm27, 0.0
      %59 = vst.msk [vmem:[#allocation3 + $0x78] sm:$0xff] %vm27, 0.0
      %vm60 = vcmask 0
      %61 = vst.msk [vmem:[#allocation4] sm:$0x1] %vm60, 0.0
    $region17: #{tpu_custom_call.1} parent=1 // pred_fallthru
      _
    %v62 = vld [vmem:[%s1] sm:$0xf]
    %v63 = vld [vmem:[%s1 + $0x4] sm:$0xf]
    %v64 = vld [vmem:[%s1 + $0x8] sm:$0xf]
    %v65 = vld [vmem:[%s1 + $0xc] sm:$0xf]
    %v66 = vld [vmem:[%s1 + $0x10] sm:$0xf]
    %v67 = vld [vmem:[%s1 + $0x14] sm:$0xf]
    %v68 = vld [vmem:[%s1 + $0x18] sm:$0xf]
    %v69 = vld [vmem:[%s1 + $0x1c] sm:$0xf]
    %v70 = vld [vmem:[%s1 + $0x20] sm:$0xf]
    %v71 = vld [vmem:[%s1 + $0x24] sm:$0xf]
    %v72 = vld [vmem:[%s1 + $0x28] sm:$0xf]
    %v73 = vld [vmem:[%s1 + $0x2c] sm:$0xf]
    %v74 = vld [vmem:[%s1 + $0x30] sm:$0xf]
    %v75 = vld [vmem:[%s1 + $0x34] sm:$0xf]
    %v76 = vld [vmem:[%s1 + $0x38] sm:$0xf]
    %v77 = vld [vmem:[%s1 + $0x3c] sm:$0xf]
    %v78 = vld [vmem:[%s2] sm:$0xf]
    %v79 = vld [vmem:[%s2 + $0x4] sm:$0xf]
    %v80 = vld [vmem:[%s2 + $0x8] sm:$0xf]
    %v81 = vld [vmem:[%s2 + $0xc] sm:$0xf]
    %v98 = vunpack.c.l.b16 %v62
    %v99 = vunpack.c.l.b16 %v63
    %v100 = vunpack.c.l.b16 %v64
    %v101 = vunpack.c.l.b16 %v65
    %v102 = vunpack.c.l.b16 %v66
    %v103 = vunpack.c.l.b16 %v67
    %v104 = vunpack.c.l.b16 %v68
    %v105 = vunpack.c.l.b16 %v69
    %v106 = vunpack.c.l.b16 %v70
    %v107 = vunpack.c.l.b16 %v71
    %v108 = vunpack.c.l.b16 %v72
    %v109 = vunpack.c.l.b16 %v73
    %v110 = vunpack.c.l.b16 %v74
    %v111 = vunpack.c.l.b16 %v75
    %v112 = vunpack.c.l.b16 %v76
    %v113 = vunpack.c.l.b16 %v77
    %v114 = vpack.c.b16 %v99, %v98
    %v115 = vpack.c.b16 %v101, %v100
    %v116 = vpack.c.b16 %v103, %v102
    %v117 = vpack.c.b16 %v105, %v104
    %v118 = vpack.c.b16 %v107, %v106
    %v119 = vpack.c.b16 %v109, %v108
    %v120 = vpack.c.b16 %v111, %v110
    %v121 = vpack.c.b16 %v113, %v112
    %v126 = vunpack.c.l.b16 %v78
    %v127 = vunpack.c.l.b16 %v79
    %v128 = vunpack.c.l.b16 %v80
    %v129 = vunpack.c.l.b16 %v81
    %v130 = vpack.c.b16 %v127, %v126
    %v131 = vpack.c.b16 %v129, %v128
    %vm134 = vcmask 261120
    %v136 = vsel %vm134, %v114, 0
    %v139 = vsel %vm134, %v115, 0
    %v142 = vsel %vm134, %v116, 0
    %v145 = vsel %vm134, %v117, 0
    %v148 = vsel %vm134, %v118, 0
    %v151 = vsel %vm134, %v119, 0
    %v154 = vsel %vm134, %v120, 0
    %v157 = vsel %vm134, %v121, 0
    %159 = vmatprep.subr.bf16.mxu0 0
    %160 = vmatpush1.bf16.msra.mxu0 0
    %161 = vmatprep.subr.bf16.mxu0 0
    %162 = vmatpush1.bf16.msra.mxu0 0
    %163 = vmatprep.subr.bf16.mxu0 0
    %164 = vmatpush1.bf16.msra.mxu0 0
    %165 = vmatprep.subr.bf16.mxu0 0
    %166 = vmatpush1.bf16.msra.mxu0 0
    %167 = vmatprep.subr.bf16.mxu0 0
    %168 = vmatpush1.bf16.msra.mxu0 0
    %169 = vmatprep.subr.bf16.mxu0 0
    %170 = vmatpush1.bf16.msra.mxu0 0
    %171 = vmatprep.subr.bf16.mxu0 0
    %172 = vmatpush1.bf16.msra.mxu0 %v131
    %173 = vmatprep.subr.bf16.mxu0 0
    %174 = vmatpush1.bf16.msra.mxu0 %v130
    %175 = vmatprep.subr.bf16.mxu0 0
    %176 = vmatpush2.bf16.msra.mxu0 0
    %177 = vmatprep.subr.bf16.mxu0 0
    %178 = vmatpush2.bf16.msra.mxu0 0
    %179 = vmatprep.subr.bf16.mxu0 0
    %180 = vmatpush2.bf16.msra.mxu0 0
    %181 = vmatprep.subr.bf16.mxu0 0
    %182 = vmatpush2.bf16.msra.mxu0 0
    %183 = vmatprep.subr.bf16.mxu0 0
    %184 = vmatpush2.bf16.msra.mxu0 0
    %185 = vmatprep.subr.bf16.mxu0 0
    %186 = vmatpush2.bf16.msra.mxu0 0
    %187 = vmatprep.subr.bf16.mxu0 0
    %188 = vmatpush2.bf16.msra.mxu0 0
    %189 = vmatprep.subr.bf16.mxu0 0
    %190 = vmatpush2.bf16.msra.mxu0 0
    %191 = vmatprep.mubr.bf16.mxu0 0
    %192 = vmatmul.mubr.bf16.gmra.mxu0 %v136
    %v193 = vpop.f32.mrf.mxu0
    %v194 = vadd.f32 0.0, %v193
    %v195 = vpop.f32.mrf.mxu0
    %v196 = vpop.f32.mrf.mxu0
    %v197 = vadd.f32 0.0, %v196
    %v198 = vpop.f32.mrf.mxu0
    %199 = vmatprep.mubr.bf16.mxu0 0
    %200 = vmatmul.mubr.bf16.gmra.mxu0 %v139
    %v201 = vpop.f32.mrf.mxu0
    %v202 = vadd.f32 0.0, %v201
    %v203 = vpop.f32.mrf.mxu0
    %v204 = vpop.f32.mrf.mxu0
    %v205 = vadd.f32 0.0, %v204
    %v206 = vpop.f32.mrf.mxu0
    %207 = vmatprep.mubr.bf16.mxu0 0
    %208 = vmatmul.mubr.bf16.gmra.mxu0 %v142
    %v209 = vpop.f32.mrf.mxu0
    %v210 = vadd.f32 0.0, %v209
    %v211 = vpop.f32.mrf.mxu0
    %v212 = vpop.f32.mrf.mxu0
    %v213 = vadd.f32 0.0, %v212
    %v214 = vpop.f32.mrf.mxu0
    %215 = vmatprep.mubr.bf16.mxu0 0
    %216 = vmatmul.mubr.bf16.gmra.mxu0 %v145
    %v217 = vpop.f32.mrf.mxu0
    %v218 = vadd.f32 0.0, %v217
    %v219 = vpop.f32.mrf.mxu0
    %v220 = vpop.f32.mrf.mxu0
    %v221 = vadd.f32 0.0, %v220
    %v222 = vpop.f32.mrf.mxu0
    %223 = vmatprep.mubr.bf16.mxu0 0
    %224 = vmatmul.mubr.bf16.gmra.mxu0 %v148
    %v225 = vpop.f32.mrf.mxu0
    %v226 = vadd.f32 0.0, %v225
    %v227 = vpop.f32.mrf.mxu0
    %v228 = vpop.f32.mrf.mxu0
    %v229 = vadd.f32 0.0, %v228
    %v230 = vpop.f32.mrf.mxu0
    %231 = vmatprep.mubr.bf16.mxu0 0
    %232 = vmatmul.mubr.bf16.gmra.mxu0 %v151
    %v233 = vpop.f32.mrf.mxu0
    %v234 = vadd.f32 0.0, %v233
    %v235 = vpop.f32.mrf.mxu0
    %v236 = vpop.f32.mrf.mxu0
    %v237 = vadd.f32 0.0, %v236
    %v238 = vpop.f32.mrf.mxu0
    %239 = vmatprep.mubr.bf16.mxu0 0
    %240 = vmatmul.mubr.bf16.gmra.mxu0 %v154
    %v241 = vpop.f32.mrf.mxu0
    %v242 = vadd.f32 0.0, %v241
    %v243 = vpop.f32.mrf.mxu0
    %v244 = vpop.f32.mrf.mxu0
    %v245 = vadd.f32 0.0, %v244
    %v246 = vpop.f32.mrf.mxu0
    %247 = vmatprep.mubr.bf16.mxu0 0
    %248 = vmatmul.mubr.bf16.gmra.mxu0 %v157
    %v249 = vpop.f32.mrf.mxu0
    %v250 = vadd.f32 0.0, %v249
    %v251 = vpop.f32.mrf.mxu0
    %v252 = vpop.f32.mrf.mxu0
    %v253 = vadd.f32 0.0, %v252
    %v254 = vpop.f32.mrf.mxu0
    %255 = vdwg.mxu0
    %v256 = vstv %s22
    %v257 = vmul.f32 %v256, %v194
    %v258 = vmul.f32 %v256, %v197
    %v259 = vmul.f32 %v256, %v202
    %v260 = vmul.f32 %v256, %v205
    %v261 = vmul.f32 %v256, %v210
    %v262 = vmul.f32 %v256, %v213
    %v263 = vmul.f32 %v256, %v218
    %v264 = vmul.f32 %v256, %v221
    %v265 = vmul.f32 %v256, %v226
    %v266 = vmul.f32 %v256, %v229
    %v267 = vmul.f32 %v256, %v234
    %v268 = vmul.f32 %v256, %v237
    %v269 = vmul.f32 %v256, %v242
    %v270 = vmul.f32 %v256, %v245
    %v271 = vmul.f32 %v256, %v250
    %v272 = vmul.f32 %v256, %v253
    %v273 = vlaneseq
    %v274 = vshrl.u32 %v273, 7
    %v275 = vadd.s32 %v274, 8
    %v276 = vadd.s32 %v274, 16
    %v277 = vadd.s32 %v274, 24
    %v278 = vadd.s32 %v274, 32
    %v279 = vadd.s32 %v274, 40
    %v280 = vadd.s32 %v274, 48
    %v281 = vadd.s32 %v274, 56
    %v282 = vadd.s32 %v274, 64
    %v283 = vadd.s32 %v274, 72
    %v284 = vadd.s32 %v274, 80
    %v285 = vadd.s32 %v274, 88
    %v286 = vadd.s32 %v274, 96
    %v287 = vadd.s32 %v274, 104
    %v288 = vadd.s32 %v274, 112
    %v289 = vadd.s32 %v274, 120
    %v290 = vstv %s20
    %v291 = vadd.s32 %v290, %v274
    %v292 = vadd.s32 %v290, %v275
    %v293 = vadd.s32 %v290, %v276
    %v294 = vadd.s32 %v290, %v277
    %v295 = vadd.s32 %v290, %v278
    %v296 = vadd.s32 %v290, %v279
    %v297 = vadd.s32 %v290, %v280
    %v298 = vadd.s32 %v290, %v281
    %v299 = vadd.s32 %v290, %v282
    %v300 = vadd.s32 %v290, %v283
    %v301 = vadd.s32 %v290, %v284
    %v302 = vadd.s32 %v290, %v285
    %v303 = vadd.s32 %v290, %v286
    %v304 = vadd.s32 %v290, %v287
    %v305 = vadd.s32 %v290, %v288
    %v306 = vadd.s32 %v290, %v289
    %vm307 = vcmp.lt.s32.totalorder %v291, 8
    %vm308 = vcmp.lt.s32.totalorder %v292, 8
    %vm309 = vcmp.lt.s32.totalorder %v293, 8
    %vm310 = vcmp.lt.s32.totalorder %v294, 8
    %vm311 = vcmp.lt.s32.totalorder %v295, 8
    %vm312 = vcmp.lt.s32.totalorder %v296, 8
    %vm313 = vcmp.lt.s32.totalorder %v297, 8
    %vm314 = vcmp.lt.s32.totalorder %v298, 8
    %vm315 = vcmp.lt.s32.totalorder %v299, 8
    %vm316 = vcmp.lt.s32.totalorder %v300, 8
    %vm317 = vcmp.lt.s32.totalorder %v301, 8
    %vm318 = vcmp.lt.s32.totalorder %v302, 8
    %vm319 = vcmp.lt.s32.totalorder %v303, 8
    %vm320 = vcmp.lt.s32.totalorder %v304, 8
    %vm321 = vcmp.lt.s32.totalorder %v305, 8
    %vm322 = vcmp.lt.s32.totalorder %v306, 8
    %v323 = vlaneseq
    %v324 = vand.u32 %v323, 127
    %v325 = vstv %s21
    %v326 = vadd.s32 %v325, %v324
    %vm327 = vcmp.lt.s32.totalorder %v326, 8
    %v328 = vsel %vm327, 1, 0
    %vm329 = vcmp.eq.s32.totalorder %v328, 1
    %v330 = vsel %vm329, %v257, -1e+30
    %v331 = vsel %vm329, %v258, -1e+30
    %v332 = vsel %vm329, %v259, -1e+30
    %v333 = vsel %vm329, %v260, -1e+30
    %v334 = vsel %vm329, %v261, -1e+30
    %v335 = vsel %vm329, %v262, -1e+30
    %v336 = vsel %vm329, %v263, -1e+30
    %v337 = vsel %vm329, %v264, -1e+30
    %v338 = vsel %vm329, %v265, -1e+30
    %v339 = vsel %vm329, %v266, -1e+30
    %v340 = vsel %vm329, %v267, -1e+30
    %v341 = vsel %vm329, %v268, -1e+30
    %v342 = vsel %vm329, %v269, -1e+30
    %v343 = vsel %vm329, %v270, -1e+30
    %v344 = vsel %vm329, %v271, -1e+30
    %v345 = vsel %vm329, %v272, -1e+30
    %v346 = vsel %vm307, 1, 0
    %v347 = vsel %vm308, 1, 0
    %v348 = vsel %vm309, 1, 0
    %v349 = vsel %vm310, 1, 0
    %v350 = vsel %vm311, 1, 0
    %v351 = vsel %vm312, 1, 0
    %v352 = vsel %vm313, 1, 0
    %v353 = vsel %vm314, 1, 0
    %v354 = vsel %vm315, 1, 0
    %v355 = vsel %vm316, 1, 0
    %v356 = vsel %vm317, 1, 0
    %v357 = vsel %vm318, 1, 0
    %v358 = vsel %vm319, 1, 0
    %v359 = vsel %vm320, 1, 0
    %v360 = vsel %vm321, 1, 0
    %v361 = vsel %vm322, 1, 0
    %vm362 = vcmp.eq.s32.totalorder %v346, 1
    %vm363 = vcmp.eq.s32.totalorder %v347, 1
    %vm364 = vcmp.eq.s32.totalorder %v348, 1
    %vm365 = vcmp.eq.s32.totalorder %v349, 1
    %vm366 = vcmp.eq.s32.totalorder %v350, 1
    %vm367 = vcmp.eq.s32.totalorder %v351, 1
    %vm368 = vcmp.eq.s32.totalorder %v352, 1
    %vm369 = vcmp.eq.s32.totalorder %v353, 1
    %vm370 = vcmp.eq.s32.totalorder %v354, 1
    %vm371 = vcmp.eq.s32.totalorder %v355, 1
    %vm372 = vcmp.eq.s32.totalorder %v356, 1
    %vm373 = vcmp.eq.s32.totalorder %v357, 1
    %vm374 = vcmp.eq.s32.totalorder %v358, 1
    %vm375 = vcmp.eq.s32.totalorder %v359, 1
    %vm376 = vcmp.eq.s32.totalorder %v360, 1
    %vm377 = vcmp.eq.s32.totalorder %v361, 1
    %v378 = vsel %vm362, %v257, -1e+30
    %v379 = vsel %vm363, %v258, -1e+30
    %v380 = vsel %vm364, %v259, -1e+30
    %v381 = vsel %vm365, %v260, -1e+30
    %v382 = vsel %vm366, %v261, -1e+30
    %v383 = vsel %vm367, %v262, -1e+30
    %v384 = vsel %vm368, %v263, -1e+30
    %v385 = vsel %vm369, %v264, -1e+30
    %v386 = vsel %vm370, %v265, -1e+30
    %v387 = vsel %vm371, %v266, -1e+30
    %v388 = vsel %vm372, %v267, -1e+30
    %v389 = vsel %vm373, %v268, -1e+30
    %v390 = vsel %vm374, %v269, -1e+30
    %v391 = vsel %vm375, %v270, -1e+30
    %v392 = vsel %vm376, %v271, -1e+30
    %v393 = vsel %vm377, %v272, -1e+30
    %v394 = vld [vmem:[#allocation2] sm:$0xff]
    %v395 = vld [vmem:[#allocation2 + $0x8] sm:$0xff]
    %v396 = vld [vmem:[#allocation2 + $0x10] sm:$0xff]
    %v397 = vld [vmem:[#allocation2 + $0x18] sm:$0xff]
    %v398 = vld [vmem:[#allocation2 + $0x20] sm:$0xff]
    %v399 = vld [vmem:[#allocation2 + $0x28] sm:$0xff]
    %v400 = vld [vmem:[#allocation2 + $0x30] sm:$0xff]
    %v401 = vld [vmem:[#allocation2 + $0x38] sm:$0xff]
    %v402 = vld [vmem:[#allocation2 + $0x40] sm:$0xff]
    %v403 = vld [vmem:[#allocation2 + $0x48] sm:$0xff]
    %v404 = vld [vmem:[#allocation2 + $0x50] sm:$0xff]
    %v405 = vld [vmem:[#allocation2 + $0x58] sm:$0xff]
    %v406 = vld [vmem:[#allocation2 + $0x60] sm:$0xff]
    %v407 = vld [vmem:[#allocation2 + $0x68] sm:$0xff]
    %v408 = vld [vmem:[#allocation2 + $0x70] sm:$0xff]
    %v409 = vld [vmem:[#allocation2 + $0x78] sm:$0xff]
    %410 = vmax.xlane.f32.xlu0 %v330
    %v411 = vpop.xlane.xlu0 %410
    %412 = vmax.xlane.f32.xlu0 %v331
    %v413 = vpop.xlane.xlu0 %412
    %414 = vmax.xlane.f32.xlu0 %v332
    %v415 = vpop.xlane.xlu0 %414
    %416 = vmax.xlane.f32.xlu0 %v333
    %v417 = vpop.xlane.xlu0 %416
    %418 = vmax.xlane.f32.xlu0 %v334
    %v419 = vpop.xlane.xlu0 %418
    %420 = vmax.xlane.f32.xlu0 %v335
    %v421 = vpop.xlane.xlu0 %420
    %422 = vmax.xlane.f32.xlu0 %v336
    %v423 = vpop.xlane.xlu0 %422
    %424 = vmax.xlane.f32.xlu0 %v337
    %v425 = vpop.xlane.xlu0 %424
    %426 = vmax.xlane.f32.xlu0 %v338
    %v427 = vpop.xlane.xlu0 %426
    %428 = vmax.xlane.f32.xlu0 %v339
    %v429 = vpop.xlane.xlu0 %428
    %430 = vmax.xlane.f32.xlu0 %v340
    %v431 = vpop.xlane.xlu0 %430
    %432 = vmax.xlane.f32.xlu0 %v341
    %v433 = vpop.xlane.xlu0 %432
    %434 = vmax.xlane.f32.xlu0 %v342
    %v435 = vpop.xlane.xlu0 %434
    %436 = vmax.xlane.f32.xlu0 %v343
    %v437 = vpop.xlane.xlu0 %436
    %438 = vmax.xlane.f32.xlu0 %v344
    %v439 = vpop.xlane.xlu0 %438
    %440 = vmax.xlane.f32.xlu0 %v345
    %v441 = vpop.xlane.xlu0 %440
    %v442 = vmax.f32 %v394, %v411
    %v443 = vmax.f32 %v395, %v413
    %v444 = vmax.f32 %v396, %v415
    %v445 = vmax.f32 %v397, %v417
    %v446 = vmax.f32 %v398, %v419
    %v447 = vmax.f32 %v399, %v421
    %v448 = vmax.f32 %v400, %v423
    %v449 = vmax.f32 %v401, %v425
    %v450 = vmax.f32 %v402, %v427
    %v451 = vmax.f32 %v403, %v429
    %v452 = vmax.f32 %v404, %v431
    %v453 = vmax.f32 %v405, %v433
    %v454 = vmax.f32 %v406, %v435
    %v455 = vmax.f32 %v407, %v437
    %v456 = vmax.f32 %v408, %v439
    %v457 = vmax.f32 %v409, %v441
    %v458 = vld [vmem:[#allocation3] sm:$0xff]
    %v459 = vld [vmem:[#allocation3 + $0x8] sm:$0xff]
    %v460 = vld [vmem:[#allocation3 + $0x10] sm:$0xff]
    %v461 = vld [vmem:[#allocation3 + $0x18] sm:$0xff]
    %v462 = vld [vmem:[#allocation3 + $0x20] sm:$0xff]
    %v463 = vld [vmem:[#allocation3 + $0x28] sm:$0xff]
    %v464 = vld [vmem:[#allocation3 + $0x30] sm:$0xff]
    %v465 = vld [vmem:[#allocation3 + $0x38] sm:$0xff]
    %v466 = vld [vmem:[#allocation3 + $0x40] sm:$0xff]
    %v467 = vld [vmem:[#allocation3 + $0x48] sm:$0xff]
    %v468 = vld [vmem:[#allocation3 + $0x50] sm:$0xff]
    %v469 = vld [vmem:[#allocation3 + $0x58] sm:$0xff]
    %v470 = vld [vmem:[#allocation3 + $0x60] sm:$0xff]
    %v471 = vld [vmem:[#allocation3 + $0x68] sm:$0xff]
    %v472 = vld [vmem:[#allocation3 + $0x70] sm:$0xff]
    %v473 = vld [vmem:[#allocation3 + $0x78] sm:$0xff]
    %v474 = vsub.f32 %v394, %v442
    %v475 = vsub.f32 %v395, %v443
    %v476 = vsub.f32 %v396, %v444
    %v477 = vsub.f32 %v397, %v445
    %v478 = vsub.f32 %v398, %v446
    %v479 = vsub.f32 %v399, %v447
    %v480 = vsub.f32 %v400, %v448
    %v481 = vsub.f32 %v401, %v449
    %v482 = vsub.f32 %v402, %v450
    %v483 = vsub.f32 %v403, %v451
    %v484 = vsub.f32 %v404, %v452
    %v485 = vsub.f32 %v405, %v453
    %v486 = vsub.f32 %v406, %v454
    %v487 = vsub.f32 %v407, %v455
    %v488 = vsub.f32 %v408, %v456
    %v489 = vsub.f32 %v409, %v457
    %v490 = vmul.f32 %v474, 1.442695
    %v491 = vpow.pop %v490
    %v492 = vmul.f32 %v475, 1.442695
    %v493 = vpow.pop %v492
    %v494 = vmul.f32 %v476, 1.442695
    %v495 = vpow.pop %v494
    %v496 = vmul.f32 %v477, 1.442695
    %v497 = vpow.pop %v496
    %v498 = vmul.f32 %v478, 1.442695
    %v499 = vpow.pop %v498
    %v500 = vmul.f32 %v479, 1.442695
    %v501 = vpow.pop %v500
    %v502 = vmul.f32 %v480, 1.442695
    %v503 = vpow.pop %v502
    %v504 = vmul.f32 %v481, 1.442695
    %v505 = vpow.pop %v504
    %v506 = vmul.f32 %v482, 1.442695
    %v507 = vpow.pop %v506
    %v508 = vmul.f32 %v483, 1.442695
    %v509 = vpow.pop %v508
    %v510 = vmul.f32 %v484, 1.442695
    %v511 = vpow.pop %v510
    %v512 = vmul.f32 %v485, 1.442695
    %v513 = vpow.pop %v512
    %v514 = vmul.f32 %v486, 1.442695
    %v515 = vpow.pop %v514
    %v516 = vmul.f32 %v487, 1.442695
    %v517 = vpow.pop %v516
    %v518 = vmul.f32 %v488, 1.442695
    %v519 = vpow.pop %v518
    %v520 = vmul.f32 %v489, 1.442695
    %v521 = vpow.pop %v520
    %v522 = vmul.f32 %v458, %v491
    %v523 = vmul.f32 %v459, %v493
    %v524 = vmul.f32 %v460, %v495
    %v525 = vmul.f32 %v461, %v497
    %v526 = vmul.f32 %v462, %v499
    %v527 = vmul.f32 %v463, %v501
    %v528 = vmul.f32 %v464, %v503
    %v529 = vmul.f32 %v465, %v505
    %v530 = vmul.f32 %v466, %v507
    %v531 = vmul.f32 %v467, %v509
    %v532 = vmul.f32 %v468, %v511
    %v533 = vmul.f32 %v469, %v513
    %v534 = vmul.f32 %v470, %v515
    %v535 = vmul.f32 %v471, %v517
    %v536 = vmul.f32 %v472, %v519
    %v537 = vmul.f32 %v473, %v521
    %539 = vset.pattern.permute.xlu0 0
    %540 = vperm.xlu0 %539, %v442
    %v541 = vpop.permute.xlu0 %540
    %544 = vset.pattern.permute.xlu0 0
    %545 = vperm.xlu0 %544, %v443
    %v546 = vpop.permute.xlu0 %545
    %549 = vset.pattern.permute.xlu0 0
    %550 = vperm.xlu0 %549, %v444
    %v551 = vpop.permute.xlu0 %550
    %554 = vset.pattern.permute.xlu0 0
    %555 = vperm.xlu0 %554, %v445
    %v556 = vpop.permute.xlu0 %555
    %559 = vset.pattern.permute.xlu0 0
    %560 = vperm.xlu0 %559, %v446
    %v561 = vpop.permute.xlu0 %560
    %564 = vset.pattern.permute.xlu0 0
    %565 = vperm.xlu0 %564, %v447
    %v566 = vpop.permute.xlu0 %565
    %569 = vset.pattern.permute.xlu0 0
    %570 = vperm.xlu0 %569, %v448
    %v571 = vpop.permute.xlu0 %570
    %574 = vset.pattern.permute.xlu0 0
    %575 = vperm.xlu0 %574, %v449
    %v576 = vpop.permute.xlu0 %575
    %579 = vset.pattern.permute.xlu0 0
    %580 = vperm.xlu0 %579, %v450
    %v581 = vpop.permute.xlu0 %580
    %584 = vset.pattern.permute.xlu0 0
    %585 = vperm.xlu0 %584, %v451
    %v586 = vpop.permute.xlu0 %585
    %589 = vset.pattern.permute.xlu0 0
    %590 = vperm.xlu0 %589, %v452
    %v591 = vpop.permute.xlu0 %590
    %594 = vset.pattern.permute.xlu0 0
    %595 = vperm.xlu0 %594, %v453
    %v596 = vpop.permute.xlu0 %595
    %599 = vset.pattern.permute.xlu0 0
    %600 = vperm.xlu0 %599, %v454
    %v601 = vpop.permute.xlu0 %600
    %604 = vset.pattern.permute.xlu0 0
    %605 = vperm.xlu0 %604, %v455
    %v606 = vpop.permute.xlu0 %605
    %609 = vset.pattern.permute.xlu0 0
    %610 = vperm.xlu0 %609, %v456
    %v611 = vpop.permute.xlu0 %610
    %614 = vset.pattern.permute.xlu0 0
    %615 = vperm.xlu0 %614, %v457
    %v616 = vpop.permute.xlu0 %615
    %v618 = vsub.f32 %v330, %v541
    %v619 = vsub.f32 %v331, %v546
    %v620 = vsub.f32 %v332, %v551
    %v621 = vsub.f32 %v333, %v556
    %v622 = vsub.f32 %v334, %v561
    %v623 = vsub.f32 %v335, %v566
    %v624 = vsub.f32 %v336, %v571
    %v625 = vsub.f32 %v337, %v576
    %v626 = vsub.f32 %v338, %v581
    %v627 = vsub.f32 %v339, %v586
    %v628 = vsub.f32 %v340, %v591
    %v629 = vsub.f32 %v341, %v596
    %v630 = vsub.f32 %v342, %v601
    %v631 = vsub.f32 %v343, %v606
    %v632 = vsub.f32 %v344, %v611
    %v633 = vsub.f32 %v345, %v616
    %v634 = vmul.f32 %v618, 1.442695
    %v635 = vpow.pop %v634
    %v636 = vmul.f32 %v619, 1.442695
    %v637 = vpow.pop %v636
    %v638 = vmul.f32 %v620, 1.442695
    %v639 = vpow.pop %v638
    %v640 = vmul.f32 %v621, 1.442695
    %v641 = vpow.pop %v640
    %v642 = vmul.f32 %v622, 1.442695
    %v643 = vpow.pop %v642
    %v644 = vmul.f32 %v623, 1.442695
    %v645 = vpow.pop %v644
    %v646 = vmul.f32 %v624, 1.442695
    %v647 = vpow.pop %v646
    %v648 = vmul.f32 %v625, 1.442695
    %v649 = vpow.pop %v648
    %v650 = vmul.f32 %v626, 1.442695
    %v651 = vpow.pop %v650
    %v652 = vmul.f32 %v627, 1.442695
    %v653 = vpow.pop %v652
    %v654 = vmul.f32 %v628, 1.442695
    %v655 = vpow.pop %v654
    %v656 = vmul.f32 %v629, 1.442695
    %v657 = vpow.pop %v656
    %v658 = vmul.f32 %v630, 1.442695
    %v659 = vpow.pop %v658
    %v660 = vmul.f32 %v631, 1.442695
    %v661 = vpow.pop %v660
    %v662 = vmul.f32 %v632, 1.442695
    %v663 = vpow.pop %v662
    %v664 = vmul.f32 %v633, 1.442695
    %v665 = vpow.pop %v664
    %666 = vadd.xlane.f32.xlu0 %v635
    %v667 = vpop.xlane.xlu0 %666
    %668 = vadd.xlane.f32.xlu0 %v637
    %v669 = vpop.xlane.xlu0 %668
    %670 = vadd.xlane.f32.xlu0 %v639
    %v671 = vpop.xlane.xlu0 %670
    %672 = vadd.xlane.f32.xlu0 %v641
    %v673 = vpop.xlane.xlu0 %672
    %674 = vadd.xlane.f32.xlu0 %v643
    %v675 = vpop.xlane.xlu0 %674
    %676 = vadd.xlane.f32.xlu0 %v645
    %v677 = vpop.xlane.xlu0 %676
    %678 = vadd.xlane.f32.xlu0 %v647
    %v679 = vpop.xlane.xlu0 %678
    %680 = vadd.xlane.f32.xlu0 %v649
    %v681 = vpop.xlane.xlu0 %680
    %682 = vadd.xlane.f32.xlu0 %v651
    %v683 = vpop.xlane.xlu0 %682
    %684 = vadd.xlane.f32.xlu0 %v653
    %v685 = vpop.xlane.xlu0 %684
    %686 = vadd.xlane.f32.xlu0 %v655
    %v687 = vpop.xlane.xlu0 %686
    %688 = vadd.xlane.f32.xlu0 %v657
    %v689 = vpop.xlane.xlu0 %688
    %690 = vadd.xlane.f32.xlu0 %v659
    %v691 = vpop.xlane.xlu0 %690
    %692 = vadd.xlane.f32.xlu0 %v661
    %v693 = vpop.xlane.xlu0 %692
    %694 = vadd.xlane.f32.xlu0 %v663
    %v695 = vpop.xlane.xlu0 %694
    %696 = vadd.xlane.f32.xlu0 %v665
    %v697 = vpop.xlane.xlu0 %696
    %v698 = vadd.f32 %v522, %v667
    %v699 = vadd.f32 %v523, %v669
    %v700 = vadd.f32 %v524, %v671
    %v701 = vadd.f32 %v525, %v673
    %v702 = vadd.f32 %v526, %v675
    %v703 = vadd.f32 %v527, %v677
    %v704 = vadd.f32 %v528, %v679
    %v705 = vadd.f32 %v529, %v681
    %v706 = vadd.f32 %v530, %v683
    %v707 = vadd.f32 %v531, %v685
    %v708 = vadd.f32 %v532, %v687
    %v709 = vadd.f32 %v533, %v689
    %v710 = vadd.f32 %v534, %v691
    %v711 = vadd.f32 %v535, %v693
    %v712 = vadd.f32 %v536, %v695
    %v713 = vadd.f32 %v537, %v697
    %vm714 = vcmask 7168
    %715 = vst.msk [vmem:[#allocation3] sm:$0xff] %vm714, %v698
    %716 = vst.msk [vmem:[#allocation3 + $0x8] sm:$0xff] %vm714, %v699
    %717 = vst.msk [vmem:[#allocation3 + $0x10] sm:$0xff] %vm714, %v700
    %718 = vst.msk [vmem:[#allocation3 + $0x18] sm:$0xff] %vm714, %v701
    %719 = vst.msk [vmem:[#allocation3 + $0x20] sm:$0xff] %vm714, %v702
    %720 = vst.msk [vmem:[#allocation3 + $0x28] sm:$0xff] %vm714, %v703
    %721 = vst.msk [vmem:[#allocation3 + $0x30] sm:$0xff] %vm714, %v704
    %722 = vst.msk [vmem:[#allocation3 + $0x38] sm:$0xff] %vm714, %v705
    %723 = vst.msk [vmem:[#allocation3 + $0x40] sm:$0xff] %vm714, %v706
    %724 = vst.msk [vmem:[#allocation3 + $0x48] sm:$0xff] %vm714, %v707
    %725 = vst.msk [vmem:[#allocation3 + $0x50] sm:$0xff] %vm714, %v708
    %726 = vst.msk [vmem:[#allocation3 + $0x58] sm:$0xff] %vm714, %v709
    %727 = vst.msk [vmem:[#allocation3 + $0x60] sm:$0xff] %vm714, %v710
    %728 = vst.msk [vmem:[#allocation3 + $0x68] sm:$0xff] %vm714, %v711
    %729 = vst.msk [vmem:[#allocation3 + $0x70] sm:$0xff] %vm714, %v712
    %730 = vst.msk [vmem:[#allocation3 + $0x78] sm:$0xff] %vm714, %v713
    %731 = vst.msk [vmem:[#allocation2] sm:$0xff] %vm714, %v442
    %732 = vst.msk [vmem:[#allocation2 + $0x8] sm:$0xff] %vm714, %v443
    %733 = vst.msk [vmem:[#allocation2 + $0x10] sm:$0xff] %vm714, %v444
    %734 = vst.msk [vmem:[#allocation2 + $0x18] sm:$0xff] %vm714, %v445
    %735 = vst.msk [vmem:[#allocation2 + $0x20] sm:$0xff] %vm714, %v446
    %736 = vst.msk [vmem:[#allocation2 + $0x28] sm:$0xff] %vm714, %v447
    %737 = vst.msk [vmem:[#allocation2 + $0x30] sm:$0xff] %vm714, %v448
    %738 = vst.msk [vmem:[#allocation2 + $0x38] sm:$0xff] %vm714, %v449
    %739 = vst.msk [vmem:[#allocation2 + $0x40] sm:$0xff] %vm714, %v450
    %740 = vst.msk [vmem:[#allocation2 + $0x48] sm:$0xff] %vm714, %v451
    %741 = vst.msk [vmem:[#allocation2 + $0x50] sm:$0xff] %vm714, %v452
    %742 = vst.msk [vmem:[#allocation2 + $0x58] sm:$0xff] %vm714, %v453
    %743 = vst.msk [vmem:[#allocation2 + $0x60] sm:$0xff] %vm714, %v454
    %744 = vst.msk [vmem:[#allocation2 + $0x68] sm:$0xff] %vm714, %v455
    %745 = vst.msk [vmem:[#allocation2 + $0x70] sm:$0xff] %vm714, %v456
    %746 = vst.msk [vmem:[#allocation2 + $0x78] sm:$0xff] %vm714, %v457
    %v747 = vmax.f32 %v378, %v382
    %v748 = vmax.f32 %v379, %v383
    %v749 = vmax.f32 %v380, %v384
    %v750 = vmax.f32 %v381, %v385
    %v751 = vmax.f32 %v747, %v386
    %v752 = vmax.f32 %v748, %v387
    %v753 = vmax.f32 %v749, %v388
    %v754 = vmax.f32 %v750, %v389
    %v755 = vmax.f32 %v751, %v390
    %v756 = vmax.f32 %v752, %v391
    %v757 = vmax.f32 %v753, %v392
    %v758 = vmax.f32 %v754, %v393
    %v759 = vmax.f32 %v755, %v756
    %v760 = vmax.f32 %v757, %v758
    %v761 = vmax.f32 %v759, %v760
    %v762 = vrot.slane %v761, 4
    %v763 = vmax.f32 %v761, %v762
    %v764 = vrot.slane %v763, 2
    %v765 = vmax.f32 %v763, %v764
    %v766 = vrot.slane %v765, 1
    %v767 = vmax.f32 %v765, %v766
    %v768 = vsub.f32 %v378, %v767
    %v769 = vsub.f32 %v379, %v767
    %v770 = vsub.f32 %v380, %v767
    %v771 = vsub.f32 %v381, %v767
    %v772 = vsub.f32 %v382, %v767
    %v773 = vsub.f32 %v383, %v767
    %v774 = vsub.f32 %v384, %v767
    %v775 = vsub.f32 %v385, %v767
    %v776 = vsub.f32 %v386, %v767
    %v777 = vsub.f32 %v387, %v767
    %v778 = vsub.f32 %v388, %v767
    %v779 = vsub.f32 %v389, %v767
    %v780 = vsub.f32 %v390, %v767
    %v781 = vsub.f32 %v391, %v767
    %v782 = vsub.f32 %v392, %v767
    %v783 = vsub.f32 %v393, %v767
    %v784 = vmul.f32 %v768, 1.442695
    %v785 = vpow.pop %v784
    %v786 = vmul.f32 %v769, 1.442695
    %v787 = vpow.pop %v786
    %v788 = vmul.f32 %v770, 1.442695
    %v789 = vpow.pop %v788
    %v790 = vmul.f32 %v771, 1.442695
    %v791 = vpow.pop %v790
    %v792 = vmul.f32 %v772, 1.442695
    %v793 = vpow.pop %v792
    %v794 = vmul.f32 %v773, 1.442695
    %v795 = vpow.pop %v794
    %v796 = vmul.f32 %v774, 1.442695
    %v797 = vpow.pop %v796
    %v798 = vmul.f32 %v775, 1.442695
    %v799 = vpow.pop %v798
    %v800 = vmul.f32 %v776, 1.442695
    %v801 = vpow.pop %v800
    %v802 = vmul.f32 %v777, 1.442695
    %v803 = vpow.pop %v802
    %v804 = vmul.f32 %v778, 1.442695
    %v805 = vpow.pop %v804
    %v806 = vmul.f32 %v779, 1.442695
    %v807 = vpow.pop %v806
    %v808 = vmul.f32 %v780, 1.442695
    %v809 = vpow.pop %v808
    %v810 = vmul.f32 %v781, 1.442695
    %v811 = vpow.pop %v810
    %v812 = vmul.f32 %v782, 1.442695
    %v813 = vpow.pop %v812
    %v814 = vmul.f32 %v783, 1.442695
    %v815 = vpow.pop %v814
    %v816 = vadd.f32 %v785, %v787
    %v817 = vadd.f32 %v816, %v789
    %v818 = vadd.f32 %v817, %v791
    %v819 = vadd.f32 %v818, %v793
    %v820 = vadd.f32 %v819, %v795
    %v821 = vadd.f32 %v820, %v797
    %v822 = vadd.f32 %v821, %v799
    %v823 = vadd.f32 %v822, %v801
    %v824 = vadd.f32 %v823, %v803
    %v825 = vadd.f32 %v824, %v805
    %v826 = vadd.f32 %v825, %v807
    %v827 = vadd.f32 %v826, %v809
    %v828 = vadd.f32 %v827, %v811
    %v829 = vadd.f32 %v828, %v813
    %v830 = vadd.f32 %v829, %v815
    %v831 = vrot.slane %v830, 4
    %v832 = vadd.f32 %v830, %v831
    %v833 = vrot.slane %v832, 2
    %v834 = vadd.f32 %v832, %v833
    %v835 = vrot.slane %v834, 1
    %v836 = vadd.f32 %v834, %v835
    %v837 = vlog2.pop %v836
    %v838 = vmul.f32 %v837, 0.6931472
    %v839 = vadd.f32 %v767, %v838
    %840 = vst [vmem:[#allocation6] sm:$0x1] %v839
    %s841 = sadd.s32 %s21, 128
    %p842 = scmp.lt.s32.totalorder %s20, %s841
    %s843 = sadd.s32 %s20, 128
    %p844 = scmp.lt.s32.totalorder %s21, %s843
    %p845 = pnand %p842, %p844
    %p846 = pneg %p845
    // Predicated region
    $region18: #{tpu_custom_call.1} parent=1 // pred_check
      _
    $region19: #{tpu_custom_call.1} parent=1 // pred_check_branch
      %848 = sbr.rel (%p845) target = $region21
    $region20: #{tpu_custom_call.1} parent=1 // pred_region
      %vm849 = vcmp.eq.s32.totalorder %v291, %v326
      %vm850 = vcmp.eq.s32.totalorder %v292, %v326
      %vm851 = vcmp.eq.s32.totalorder %v293, %v326
      %vm852 = vcmp.eq.s32.totalorder %v294, %v326
      %vm853 = vcmp.eq.s32.totalorder %v295, %v326
      %vm854 = vcmp.eq.s32.totalorder %v296, %v326
      %vm855 = vcmp.eq.s32.totalorder %v297, %v326
      %vm856 = vcmp.eq.s32.totalorder %v298, %v326
      %vm857 = vcmp.eq.s32.totalorder %v299, %v326
      %vm858 = vcmp.eq.s32.totalorder %v300, %v326
      %vm859 = vcmp.eq.s32.totalorder %v301, %v326
      %vm860 = vcmp.eq.s32.totalorder %v302, %v326
      %vm861 = vcmp.eq.s32.totalorder %v303, %v326
      %vm862 = vcmp.eq.s32.totalorder %v304, %v326
      %vm863 = vcmp.eq.s32.totalorder %v305, %v326
      %vm864 = vcmp.eq.s32.totalorder %v306, %v326
      %vm865 = vmand %vm849, %vm362
      %vm866 = vmand %vm850, %vm363
      %vm867 = vmand %vm851, %vm364
      %vm868 = vmand %vm852, %vm365
      %vm869 = vmand %vm853, %vm366
      %vm870 = vmand %vm854, %vm367
      %vm871 = vmand %vm855, %vm368
      %vm872 = vmand %vm856, %vm369
      %vm873 = vmand %vm857, %vm370
      %vm874 = vmand %vm858, %vm371
      %vm875 = vmand %vm859, %vm372
      %vm876 = vmand %vm860, %vm373
      %vm877 = vmand %vm861, %vm374
      %vm878 = vmand %vm862, %vm375
      %vm879 = vmand %vm863, %vm376
      %vm880 = vmand %vm864, %vm377
      %v881 = vld [vmem:[#allocation4] sm:$0x1]
      %v882 = vsel %vm865, %v257, 0.0
      %v883 = vsel %vm866, %v258, 0.0
      %v884 = vsel %vm867, %v259, 0.0
      %v885 = vsel %vm868, %v260, 0.0
      %v886 = vsel %vm869, %v261, 0.0
      %v887 = vsel %vm870, %v262, 0.0
      %v888 = vsel %vm871, %v263, 0.0
      %v889 = vsel %vm872, %v264, 0.0
      %v890 = vsel %vm873, %v265, 0.0
      %v891 = vsel %vm874, %v266, 0.0
      %v892 = vsel %vm875, %v267, 0.0
      %v893 = vsel %vm876, %v268, 0.0
      %v894 = vsel %vm877, %v269, 0.0
      %v895 = vsel %vm878, %v270, 0.0
      %v896 = vsel %vm879, %v271, 0.0
      %v897 = vsel %vm880, %v272, 0.0
      %v898 = vadd.f32 %v882, %v883
      %v899 = vadd.f32 %v898, %v884
      %v900 = vadd.f32 %v899, %v885
      %v901 = vadd.f32 %v900, %v886
      %v902 = vadd.f32 %v901, %v887
      %v903 = vadd.f32 %v902, %v888
      %v904 = vadd.f32 %v903, %v889
      %v905 = vadd.f32 %v904, %v890
      %v906 = vadd.f32 %v905, %v891
      %v907 = vadd.f32 %v906, %v892
      %v908 = vadd.f32 %v907, %v893
      %v909 = vadd.f32 %v908, %v894
      %v910 = vadd.f32 %v909, %v895
      %v911 = vadd.f32 %v910, %v896
      %v912 = vadd.f32 %v911, %v897
      %913 = vadd.xlane.f32.xlu0 %v912
      %v914 = vpop.xlane.xlu0 %913
      %v915 = vrot.slane %v914, 4
      %v916 = vadd.f32 %v914, %v915
      %v917 = vrot.slane %v916, 2
      %v918 = vadd.f32 %v916, %v917
      %v919 = vrot.slane %v918, 1
      %v920 = vadd.f32 %v918, %v919
      %s921 = vtos %v920
      %s922 = smul.f32 %s921, 2.0
      %v923 = vstv %s922
      %v924 = vsub.f32 %v881, %v923
      %vm925 = vcmask 0
      %926 = vst.msk [vmem:[#allocation4] sm:$0x1] %vm925, %v924
    $region21: #{tpu_custom_call.1} parent=1 // pred_fallthru
      _
    // Predicated region
    $region22: #{tpu_custom_call.1} parent=1 // pred_check
      %p927 = pneg %p23
    $region23: #{tpu_custom_call.1} parent=1 // pred_check_branch
      %929 = sbr.rel (%p927) target = $region25
    $region24: #{tpu_custom_call.1} parent=1 // pred_region
      %v930 = vld [vmem:[#allocation2] sm:$0xff]
      %v931 = vld [vmem:[#allocation2 + $0x8] sm:$0xff]
      %v932 = vld [vmem:[#allocation2 + $0x10] sm:$0xff]
      %v933 = vld [vmem:[#allocation2 + $0x18] sm:$0xff]
      %v934 = vld [vmem:[#allocation2 + $0x20] sm:$0xff]
      %v935 = vld [vmem:[#allocation2 + $0x28] sm:$0xff]
      %v936 = vld [vmem:[#allocation2 + $0x30] sm:$0xff]
      %v937 = vld [vmem:[#allocation2 + $0x38] sm:$0xff]
      %v938 = vld [vmem:[#allocation2 + $0x40] sm:$0xff]
      %v939 = vld [vmem:[#allocation2 + $0x48] sm:$0xff]
      %v940 = vld [vmem:[#allocation2 + $0x50] sm:$0xff]
      %v941 = vld [vmem:[#allocation2 + $0x58] sm:$0xff]
      %v942 = vld [vmem:[#allocation2 + $0x60] sm:$0xff]
      %v943 = vld [vmem:[#allocation2 + $0x68] sm:$0xff]
      %v944 = vld [vmem:[#allocation2 + $0x70] sm:$0xff]
      %v945 = vld [vmem:[#allocation2 + $0x78] sm:$0xff]
      %v946 = vld [vmem:[#allocation3] sm:$0xff]
      %v947 = vld [vmem:[#allocation3 + $0x8] sm:$0xff]
      %v948 = vld [vmem:[#allocation3 + $0x10] sm:$0xff]
      %v949 = vld [vmem:[#allocation3 + $0x18] sm:$0xff]
      %v950 = vld [vmem:[#allocation3 + $0x20] sm:$0xff]
      %v951 = vld [vmem:[#allocation3 + $0x28] sm:$0xff]
      %v952 = vld [vmem:[#allocation3 + $0x30] sm:$0xff]
      %v953 = vld [vmem:[#allocation3 + $0x38] sm:$0xff]
      %v954 = vld [vmem:[#allocation3 + $0x40] sm:$0xff]
      %v955 = vld [vmem:[#allocation3 + $0x48] sm:$0xff]
      %v956 = vld [vmem:[#allocation3 + $0x50] sm:$0xff]
      %v957 = vld [vmem:[#allocation3 + $0x58] sm:$0xff]
      %v958 = vld [vmem:[#allocation3 + $0x60] sm:$0xff]
      %v959 = vld [vmem:[#allocation3 + $0x68] sm:$0xff]
      %v960 = vld [vmem:[#allocation3 + $0x70] sm:$0xff]
      %v961 = vld [vmem:[#allocation3 + $0x78] sm:$0xff]
      %v962 = vlog2.pop %v946
      %v963 = vmul.f32 %v962, 0.6931472
      %v964 = vlog2.pop %v947
      %v965 = vmul.f32 %v964, 0.6931472
      %v966 = vlog2.pop %v948
      %v967 = vmul.f32 %v966, 0.6931472
      %v968 = vlog2.pop %v949
      %v969 = vmul.f32 %v968, 0.6931472
      %v970 = vlog2.pop %v950
      %v971 = vmul.f32 %v970, 0.6931472
      %v972 = vlog2.pop %v951
      %v973 = vmul.f32 %v972, 0.6931472
      %v974 = vlog2.pop %v952
      %v975 = vmul.f32 %v974, 0.6931472
      %v976 = vlog2.pop %v953
      %v977 = vmul.f32 %v976, 0.6931472
      %v978 = vlog2.pop %v954
      %v979 = vmul.f32 %v978, 0.6931472
      %v980 = vlog2.pop %v955
      %v981 = vmul.f32 %v980, 0.6931472
      %v982 = vlog2.pop %v956
      %v983 = vmul.f32 %v982, 0.6931472
      %v984 = vlog2.pop %v957
      %v985 = vmul.f32 %v984, 0.6931472
      %v986 = vlog2.pop %v958
      %v987 = vmul.f32 %v986, 0.6931472
      %v988 = vlog2.pop %v959
      %v989 = vmul.f32 %v988, 0.6931472
      %v990 = vlog2.pop %v960
      %v991 = vmul.f32 %v990, 0.6931472
      %v992 = vlog2.pop %v961
      %v993 = vmul.f32 %v992, 0.6931472
      %v994 = vadd.f32 %v930, %v963
      %v995 = vadd.f32 %v931, %v965
      %v996 = vadd.f32 %v932, %v967
      %v997 = vadd.f32 %v933, %v969
      %v998 = vadd.f32 %v934, %v971
      %v999 = vadd.f32 %v935, %v973
      %v1000 = vadd.f32 %v936, %v975
      %v1001 = vadd.f32 %v937, %v977
      %v1002 = vadd.f32 %v938, %v979
      %v1003 = vadd.f32 %v939, %v981
      %v1004 = vadd.f32 %v940, %v983
      %v1005 = vadd.f32 %v941, %v985
      %v1006 = vadd.f32 %v942, %v987
      %v1007 = vadd.f32 %v943, %v989
      %v1008 = vadd.f32 %v944, %v991
      %v1009 = vadd.f32 %v945, %v993
      %v1010 = vsel %vm307, %v994, 0.0
      %v1011 = vsel %vm308, %v995, 0.0
      %v1012 = vsel %vm309, %v996, 0.0
      %v1013 = vsel %vm310, %v997, 0.0
      %v1014 = vsel %vm311, %v998, 0.0
      %v1015 = vsel %vm312, %v999, 0.0
      %v1016 = vsel %vm313, %v1000, 0.0
      %v1017 = vsel %vm314, %v1001, 0.0
      %v1018 = vsel %vm315, %v1002, 0.0
      %v1019 = vsel %vm316, %v1003, 0.0
      %v1020 = vsel %vm317, %v1004, 0.0
      %v1021 = vsel %vm318, %v1005, 0.0
      %v1022 = vsel %vm319, %v1006, 0.0
      %v1023 = vsel %vm320, %v1007, 0.0
      %v1024 = vsel %vm321, %v1008, 0.0
      %v1025 = vsel %vm322, %v1009, 0.0
      %v1026 = vld [vmem:[#allocation4] sm:$0x1]
      %v1027 = vsel %vm714, %v1010, 0.0
      %v1028 = vsel %vm714, %v1011, 0.0
      %v1029 = vadd.f32 %v1027, %v1028
      %v1030 = vsel %vm714, %v1012, 0.0
      %v1031 = vadd.f32 %v1029, %v1030
      %v1032 = vsel %vm714, %v1013, 0.0
      %v1033 = vadd.f32 %v1031, %v1032
      %v1034 = vsel %vm714, %v1014, 0.0
      %v1035 = vadd.f32 %v1033, %v1034
      %v1036 = vsel %vm714, %v1015, 0.0
      %v1037 = vadd.f32 %v1035, %v1036
      %v1038 = vsel %vm714, %v1016, 0.0
      %v1039 = vadd.f32 %v1037, %v1038
      %v1040 = vsel %vm714, %v1017, 0.0
      %v1041 = vadd.f32 %v1039, %v1040
      %v1042 = vsel %vm714, %v1018, 0.0
      %v1043 = vadd.f32 %v1041, %v1042
      %v1044 = vsel %vm714, %v1019, 0.0
      %v1045 = vadd.f32 %v1043, %v1044
      %v1046 = vsel %vm714, %v1020, 0.0
      %v1047 = vadd.f32 %v1045, %v1046
      %v1048 = vsel %vm714, %v1021, 0.0
      %v1049 = vadd.f32 %v1047, %v1048
      %v1050 = vsel %vm714, %v1022, 0.0
      %v1051 = vadd.f32 %v1049, %v1050
      %v1052 = vsel %vm714, %v1023, 0.0
      %v1053 = vadd.f32 %v1051, %v1052
      %v1054 = vsel %vm714, %v1024, 0.0
      %v1055 = vadd.f32 %v1053, %v1054
      %v1056 = vsel %vm714, %v1025, 0.0
      %v1057 = vadd.f32 %v1055, %v1056
      %1058 = vadd.xlane.f32.xlu0 %v1057
      %v1059 = vpop.xlane.xlu0 %1058
      %v1060 = vrot.slane %v1059, 4
      %v1061 = vadd.f32 %v1059, %v1060
      %v1062 = vrot.slane %v1061, 2
      %v1063 = vadd.f32 %v1061, %v1062
      %v1064 = vrot.slane %v1063, 1
      %v1065 = vadd.f32 %v1063, %v1064
      %s1066 = vtos %v1065
      %v1067 = vstv %s1066
      %v1068 = vadd.f32 %v1026, %v1067
      %vm1069 = vcmask 0
      %1070 = vst.msk [vmem:[#allocation8] sm:$0x1] %vm1069, %v1068
    $region25: #{tpu_custom_call.1} parent=1 // pred_fallthru
      _
    // Predicated region
    $region26: #{tpu_custom_call.1} parent=1 // pred_check
      _
    $region27: #{tpu_custom_call.1} parent=1 // pred_check_branch
      %1072 = sbr.rel (0) target = $region29
    $region28: #{tpu_custom_call.1} parent=1 // pred_region
      %s1074 = ssub.s32 16, 16
      %1075 = vsyncadd [#allocation7], %s1074
      %s1077 = sshll.u32 [#allocation6], 4
      %s1078 = int_to_ptr.vmem [resolvable:$true] %s1077
      %1080 = dma.vmem_to_hbm [thread:$0]  %s1078, 16, %s3, [#allocation7]
    $region29: #{tpu_custom_call.1} parent=1 // pred_fallthru
      _
    // Predicated region
    $region30: #{tpu_custom_call.1} parent=1 // pred_check
      _
    $region31: #{tpu_custom_call.1} parent=1 // pred_check_branch
      %1082 = sbr.rel (0) target = $region33
    $region32: #{tpu_custom_call.1} parent=1 // pred_region
      %s1084 = ssub.s32 16, 16
      %1085 = vsyncadd [#allocation9], %s1084
      %s1087 = sshll.u32 [#allocation8], 4
      %s1088 = int_to_ptr.vmem [resolvable:$true] %s1087
      %1090 = dma.vmem_to_hbm [thread:$0]  %s1088, 16, %s4, [#allocation9]
    $region33: #{tpu_custom_call.1} parent=1 // pred_fallthru
      _
    // Predicated region
    $region34: #{tpu_custom_call.1} parent=1 // pred_check
      _
    $region35: #{tpu_custom_call.1} parent=1 // pred_check_branch
      %1092 = sbr.rel (0) target = $region37
    $region36: #{tpu_custom_call.1} parent=1 // pred_region
      %1093 = dma.done [#allocation7], 16
    $region37: #{tpu_custom_call.1} parent=1 // pred_fallthru
      _
    // Predicated region
    $region38: #{tpu_custom_call.1} parent=1 // pred_check
      _
    $region39: #{tpu_custom_call.1} parent=1 // pred_check_branch
      %1095 = sbr.rel (0) target = $region41
    $region40: #{tpu_custom_call.1} parent=1 // pred_region
      %1096 = dma.done [#allocation9], 16
    $region41: #{tpu_custom_call.1} parent=1 // pred_fallthru
      _
    %1097 = vsyncpa [#allocation7], 1
    %1098 = vsyncpa [#allocation9], 1

</llo_original>
